<compile_context>
chip_gen: v7x
topology: tpu7x:2x2x1
jax: 0.10.0
libtpu: 0.0.40
codegen_flags: <defaults>
</compile_context>

<pallas_src>
import jax
import jax.numpy as jnp
from jax.experimental import pallas as pl
from jax.experimental.pallas import tpu as pltpu

HIDDEN = 256
TB_MAX = 512          # max batch-tile rows (per-tile VMEM ~2 MB incl. activation slabs)
_SMALL_BATCH = 512    # below this, run the whole batch as one tile (no dead rows)


def critic_kernel(s_ref, a_ref,
                  w14s_ref, w14a_ref, b14_ref,
                  w2_ref, b2_ref, w5_ref, b5_ref,
                  w36_ref, b36_ref,
                  q_ref):
    # bf16 operands for the MXU; accumulate in f32.
    s = s_ref[...].astype(jnp.bfloat16)
    a = a_ref[...].astype(jnp.bfloat16)

    # --- Fused layer 1 for both heads (in-kernel concat via split weights) ---
    # hg: (TB, 2*HIDDEN) = [state|action] @ [W1|W4] + [b1|b4]
    hg = (jnp.dot(s, w14s_ref[...], preferred_element_type=jnp.float32)
          + jnp.dot(a, w14a_ref[...], preferred_element_type=jnp.float32)
          + b14_ref[...])
    hg = jnp.maximum(hg, 0.0).astype(jnp.bfloat16)   # single ReLU+cast pass on the slab

    # --- Layer 2 / 5 (kept as two matmuls: cheap on all chips, see TODO above) ---
    h = jnp.dot(hg[:, :HIDDEN], w2_ref[...], preferred_element_type=jnp.float32) + b2_ref[...]
    g = jnp.dot(hg[:, HIDDEN:], w5_ref[...], preferred_element_type=jnp.float32) + b5_ref[...]

    # --- Fused heads: lane-aligned (256-boundary) concat, one ReLU+cast pass,
    # one block-diagonal (512, 2) matmul, one (TB, 2) store.
    hg2 = jnp.maximum(jnp.concatenate([h, g], axis=-1), 0.0).astype(jnp.bfloat16)
    q_ref[...] = (jnp.dot(hg2, w36_ref[...], preferred_element_type=jnp.float32)
                  + b36_ref[...]).astype(q_ref.dtype)


def init_critic_params(key, state_dim, action_dim):
    """Deterministic PyTorch-style (uniform +/- 1/sqrt(fan_in)) init.

    Returned as a list of (W, b) with W stored as (in, out), b as (1, out).
    """
    in_dim = state_dim + action_dim
    dims = [(in_dim, HIDDEN), (HIDDEN, HIDDEN), (HIDDEN, 1),
            (in_dim, HIDDEN), (HIDDEN, HIDDEN), (HIDDEN, 1)]
    params = []
    for (fan_in, fan_out) in dims:
        key, kw, kb = jax.random.split(key, 3)
        bound = 1.0 / jnp.sqrt(jnp.float32(fan_in))
        w = jax.random.uniform(kw, (fan_in, fan_out), jnp.float32, -bound, bound)
        b = jax.random.uniform(kb, (1, fan_out), jnp.float32, -bound, bound)
        params.append((w, b))
    return params


def pack_critic_params(params, state_dim):
    """One-time packing: fuse the two heads' first layers, split along the
    state/action rows (in-kernel concat), build the block-diagonal head weight,
    and cast matmul operands to bf16."""
    (w1, b1), (w2, b2), (w3, b3), (w4, b4), (w5, b5), (w6, b6) = params
    w14 = jnp.concatenate([w1, w4], axis=1)            # (in_dim, 2*HIDDEN)
    b14 = jnp.concatenate([b1, b4], axis=1)            # (1, 2*HIDDEN) f32
    w14s = w14[:state_dim, :].astype(jnp.bfloat16)     # (state_dim, 512)
    w14a = w14[state_dim:, :].astype(jnp.bfloat16)     # (action_dim, 512)
    # Block-diagonal head weight [[w3, 0], [0, w6]] : (2*HIDDEN, 2)
    w36 = jnp.zeros((2 * HIDDEN, 2), jnp.float32)
    w36 = w36.at[:HIDDEN, 0:1].set(w3).at[HIDDEN:, 1:2].set(w6).astype(jnp.bfloat16)
    b36 = jnp.concatenate([b3, b6], axis=1)            # (1, 2) f32
    return (w14s, w14a, b14.astype(jnp.float32),
            w2.astype(jnp.bfloat16), b2.astype(jnp.float32),
            w5.astype(jnp.bfloat16), b5.astype(jnp.float32),
            w36, b36.astype(jnp.float32))


def _choose_tile(B):
    """Static batch-tile choice.

    - B < 512: a single tile covering the whole batch (block dim == full array
      dim is always legal), so rollout-sized calls do no dead-row work.
    - B >= 512: at least 2 tiles (so the "parallel" axis has work for both
      TensorCores on v7x), each <= TB_MAX rows, rounded up to a multiple of 8.
      The last block may be partial; Pallas masks its OOB writeback.
    """
    if B < _SMALL_BATCH:
        return B, 1
    ntiles = max(2, -(-B // TB_MAX))
    tile = ((-(-B // ntiles) + 7) // 8) * 8
    ntiles = -(-B // tile)
    return tile, ntiles


@jax.jit
def critic_forward(state, action, packed):
    (w14s, w14a, b14, w2, b2, w5, b5, w36, b36) = packed
    state = state.astype(jnp.float32)
    action = action.astype(jnp.float32)
    B, state_dim = state.shape
    action_dim = action.shape[1]
    in_dim = state_dim + action_dim

    tile, num_tiles = _choose_tile(B)

    resident = lambda i: (0, 0)          # weights/biases: same block every step
    batched = lambda i: (i, 0)           # state/action/output: tile i

    weight_bytes = sum(int(x.size) * x.dtype.itemsize for x in packed)
    cost = pl.CostEstimate(
        flops=2 * B * (in_dim * 2 * HIDDEN + 2 * HIDDEN * HIDDEN + 2 * HIDDEN * 2),
        transcendentals=0,
        bytes_accessed=(state.size + action.size + B * 2) * 4 + weight_bytes,
    )

    q = pl.pallas_call(
        critic_kernel,
        out_shape=jax.ShapeDtypeStruct((B, 2), jnp.float32),
        grid=(num_tiles,),
        in_specs=[
            pl.BlockSpec((tile, state_dim), batched),
            pl.BlockSpec((tile, action_dim), batched),
            pl.BlockSpec((state_dim, 2 * HIDDEN), resident),
            pl.BlockSpec((action_dim, 2 * HIDDEN), resident),
            pl.BlockSpec((1, 2 * HIDDEN), resident),
            pl.BlockSpec((HIDDEN, HIDDEN), resident),
            pl.BlockSpec((1, HIDDEN), resident),
            pl.BlockSpec((HIDDEN, HIDDEN), resident),
            pl.BlockSpec((1, HIDDEN), resident),
            pl.BlockSpec((2 * HIDDEN, 2), resident),
            pl.BlockSpec((1, 2), resident),
        ],
        out_specs=pl.BlockSpec((tile, 2), batched),
        compiler_params=pltpu.CompilerParams(
            dimension_semantics=("parallel",),   # shards batch tiles on v7x's 2 TCs
        ),
        cost_estimate=cost,
    )(state, action, w14s, w14a, b14, w2, b2, w5, b5, w36, b36)

    return q[:, 0:1], q[:, 1:2]


def critic_ref_f32(state, action, params):
    """Pure-f32 JAX reference (matches the PyTorch module exactly)."""
    sa = jnp.concatenate([state, action], axis=1).astype(jnp.float32)
    (w1, b1), (w2, b2), (w3, b3), (w4, b4), (w5, b5), (w6, b6) = params
    h = jnp.maximum(sa @ w1 + b1, 0.0)
    h = jnp.maximum(h @ w2 + b2, 0.0)
    q1 = h @ w3 + b3
    g = jnp.maximum(sa @ w4 + b4, 0.0)
    g = jnp.maximum(g @ w5 + b5, 0.0)
    q2 = g @ w6 + b6
    return q1, q2


def critic_ref_bf16(state, action, params):
    """Reference with the same bf16-operand / f32-accumulate precision as the kernel."""
    bf = lambda x: x.astype(jnp.bfloat16)
    dot = lambda x, w: jnp.dot(bf(x), bf(w), preferred_element_type=jnp.float32)
    sa = jnp.concatenate([state, action], axis=1).astype(jnp.float32)
    (w1, b1), (w2, b2), (w3, b3), (w4, b4), (w5, b5), (w6, b6) = params
    h = jnp.maximum(dot(sa, w1) + b1, 0.0)
    h = jnp.maximum(dot(h, w2) + b2, 0.0)
    q1 = dot(h, w3) + b3
    g = jnp.maximum(dot(sa, w4) + b4, 0.0)
    g = jnp.maximum(dot(g, w5) + b5, 0.0)
    q2 = dot(g, w6) + b6
    return q1, q2


if __name__ == "__main__":
    key = jax.random.PRNGKey(0)
    k_s1, k_a1, k_params, k_s2, k_a2 = jax.random.split(key, 5)

    state_dim = 17   # small MuJoCo-like state
    action_dim = 6

    params = init_critic_params(k_params, state_dim, action_dim)
    packed = pack_critic_params(params, state_dim)

    def run_and_check(batch, ks, ka):
        state = jax.random.normal(ks, (batch, state_dim), jnp.float32)
        action = jax.random.normal(ka, (batch, action_dim), jnp.float32)
        q1, q2 = critic_forward(state, action, packed)
        q1 = jax.block_until_ready(q1)
        q2 = jax.block_until_ready(q2)
        assert q1.shape == (batch, 1) and q2.shape == (batch, 1)
        # Tight check vs a reference using identical (bf16 operand, f32 acc) precision.
        r1b, r2b = critic_ref_bf16(state, action, params)
        assert jnp.allclose(q1, r1b, atol=2e-3, rtol=2e-3)
        assert jnp.allclose(q2, r2b, atol=2e-3, rtol=2e-3)
        # Loose check vs the pure-f32 PyTorch-equivalent reference.
        r1, r2 = critic_ref_f32(state, action, params)
        assert jnp.allclose(q1, r1, atol=5e-2, rtol=5e-2)
        assert jnp.allclose(q2, r2, atol=5e-2, rtol=5e-2)

    run_and_check(2, k_s1, k_a1)     # tiny rollout batch: single full-batch tile, no pad
    run_and_check(777, k_s2, k_a2)   # multi-tile path: 2 tiles, partial (OOB-masked) last block

    print("KERNEL_OK")
</pallas_src>

<mosaic_0001>
module attributes {stable_mosaic.version = 11 : i64} {
  func.func @critic_kernel(%arg0: i32, %arg1: memref<2x17xf32, #tpu.memory_space<vmem>>, %arg2: memref<2x6xf32, #tpu.memory_space<vmem>>, %arg3: memref<17x512xbf16, #tpu.memory_space<vmem>>, %arg4: memref<6x512xbf16, #tpu.memory_space<vmem>>, %arg5: memref<1x512xf32, #tpu.memory_space<vmem>>, %arg6: memref<256x256xbf16, #tpu.memory_space<vmem>>, %arg7: memref<1x256xf32, #tpu.memory_space<vmem>>, %arg8: memref<256x256xbf16, #tpu.memory_space<vmem>>, %arg9: memref<1x256xf32, #tpu.memory_space<vmem>>, %arg10: memref<512x2xbf16, #tpu.memory_space<vmem>>, %arg11: memref<1x2xf32, #tpu.memory_space<vmem>>, %arg12: memref<2x2xf32, #tpu.memory_space<vmem>>) attributes {dimension_semantics = [#tpu.dimension_semantics<parallel>], iteration_bounds = array<i64: 1>, scalar_prefetch = 0 : i64, scratch_operands = 0 : i64, tpu.core_type = #tpu.core_type<tc>, window_params = [{transform_indices = @transform_0, window_bounds = array<i64: 2, 17>}, {transform_indices = @transform_1, window_bounds = array<i64: 2, 6>}, {pipeline_mode = #tpu.pipeline_mode<synchronous>, transform_indices = @transform_2, window_bounds = array<i64: 17, 512>}, {pipeline_mode = #tpu.pipeline_mode<synchronous>, transform_indices = @transform_3, window_bounds = array<i64: 6, 512>}, {pipeline_mode = #tpu.pipeline_mode<synchronous>, transform_indices = @transform_4, window_bounds = array<i64: 1, 512>}, {pipeline_mode = #tpu.pipeline_mode<synchronous>, transform_indices = @transform_5, window_bounds = array<i64: 256, 256>}, {pipeline_mode = #tpu.pipeline_mode<synchronous>, transform_indices = @transform_6, window_bounds = array<i64: 1, 256>}, {pipeline_mode = #tpu.pipeline_mode<synchronous>, transform_indices = @transform_7, window_bounds = array<i64: 256, 256>}, {pipeline_mode = #tpu.pipeline_mode<synchronous>, transform_indices = @transform_8, window_bounds = array<i64: 1, 256>}, {pipeline_mode = #tpu.pipeline_mode<synchronous>, transform_indices = @transform_9, window_bounds = array<i64: 512, 2>}, {pipeline_mode = #tpu.pipeline_mode<synchronous>, transform_indices = @transform_10, window_bounds = array<i64: 1, 2>}, {transform_indices = @transform_11, window_bounds = array<i64: 2, 2>}]} {
    %c0 = arith.constant 0 : index
    %c0_0 = arith.constant 0 : index
    %0 = vector.load %arg1[%c0, %c0_0] : memref<2x17xf32, #tpu.memory_space<vmem>>, vector<2x17xf32>
    %1 = arith.truncf %0 : vector<2x17xf32> to vector<2x17xbf16>
    %c0_1 = arith.constant 0 : index
    %c0_2 = arith.constant 0 : index
    %2 = vector.load %arg2[%c0_1, %c0_2] : memref<2x6xf32, #tpu.memory_space<vmem>>, vector<2x6xf32>
    %3 = arith.truncf %2 : vector<2x6xf32> to vector<2x6xbf16>
    %c0_3 = arith.constant 0 : index
    %c0_4 = arith.constant 0 : index
    %4 = vector.load %arg3[%c0_3, %c0_4] : memref<17x512xbf16, #tpu.memory_space<vmem>>, vector<17x512xbf16>
    %cst = arith.constant dense<0.000000e+00> : vector<2x512xf32>
    %5 = tpu.matmul %1, %4, %cst {dimension_numbers = #tpu.dot_dimension_numbers<[1], [0], [0], [1], [0, 0, 1, 1], [], []>} : vector<2x17xbf16>, vector<17x512xbf16>, vector<2x512xf32> -> vector<2x512xf32>
    %c0_5 = arith.constant 0 : index
    %c0_6 = arith.constant 0 : index
    %6 = vector.load %arg4[%c0_5, %c0_6] : memref<6x512xbf16, #tpu.memory_space<vmem>>, vector<6x512xbf16>
    %cst_7 = arith.constant dense<0.000000e+00> : vector<2x512xf32>
    %7 = tpu.matmul %3, %6, %cst_7 {dimension_numbers = #tpu.dot_dimension_numbers<[1], [0], [0], [1], [0, 0, 1, 1], [], []>} : vector<2x6xbf16>, vector<6x512xbf16>, vector<2x512xf32> -> vector<2x512xf32>
    %8 = arith.addf %5, %7 : vector<2x512xf32>
    %c0_8 = arith.constant 0 : index
    %c0_9 = arith.constant 0 : index
    %9 = vector.load %arg5[%c0_8, %c0_9] : memref<1x512xf32, #tpu.memory_space<vmem>>, vector<1x512xf32>
    %10 = vector.broadcast %9 : vector<1x512xf32> to vector<2x512xf32>
    %11 = arith.addf %8, %10 : vector<2x512xf32>
    %cst_10 = arith.constant 0.000000e+00 : f32
    %12 = vector.broadcast %cst_10 : f32 to vector<2x512xf32>
    %13 = arith.maximumf %11, %12 : vector<2x512xf32>
    %14 = arith.truncf %13 : vector<2x512xf32> to vector<2x512xbf16>
    %15 = vector.extract_strided_slice %14 {offsets = [0, 0], sizes = [2, 256], strides = [1, 1]} : vector<2x512xbf16> to vector<2x256xbf16>
    %c0_11 = arith.constant 0 : index
    %c0_12 = arith.constant 0 : index
    %16 = vector.load %arg6[%c0_11, %c0_12] : memref<256x256xbf16, #tpu.memory_space<vmem>>, vector<256x256xbf16>
    %cst_13 = arith.constant dense<0.000000e+00> : vector<2x256xf32>
    %17 = tpu.matmul %15, %16, %cst_13 {dimension_numbers = #tpu.dot_dimension_numbers<[1], [0], [0], [1], [0, 0, 1, 1], [], []>} : vector<2x256xbf16>, vector<256x256xbf16>, vector<2x256xf32> -> vector<2x256xf32>
    %c0_14 = arith.constant 0 : index
    %c0_15 = arith.constant 0 : index
    %18 = vector.load %arg7[%c0_14, %c0_15] : memref<1x256xf32, #tpu.memory_space<vmem>>, vector<1x256xf32>
    %19 = vector.broadcast %18 : vector<1x256xf32> to vector<2x256xf32>
    %20 = arith.addf %17, %19 : vector<2x256xf32>
    %21 = vector.extract_strided_slice %14 {offsets = [0, 256], sizes = [2, 256], strides = [1, 1]} : vector<2x512xbf16> to vector<2x256xbf16>
    %c0_16 = arith.constant 0 : index
    %c0_17 = arith.constant 0 : index
    %22 = vector.load %arg8[%c0_16, %c0_17] : memref<256x256xbf16, #tpu.memory_space<vmem>>, vector<256x256xbf16>
    %cst_18 = arith.constant dense<0.000000e+00> : vector<2x256xf32>
    %23 = tpu.matmul %21, %22, %cst_18 {dimension_numbers = #tpu.dot_dimension_numbers<[1], [0], [0], [1], [0, 0, 1, 1], [], []>} : vector<2x256xbf16>, vector<256x256xbf16>, vector<2x256xf32> -> vector<2x256xf32>
    %c0_19 = arith.constant 0 : index
    %c0_20 = arith.constant 0 : index
    %24 = vector.load %arg9[%c0_19, %c0_20] : memref<1x256xf32, #tpu.memory_space<vmem>>, vector<1x256xf32>
    %25 = vector.broadcast %24 : vector<1x256xf32> to vector<2x256xf32>
    %26 = arith.addf %23, %25 : vector<2x256xf32>
    %27 = tpu.concatenate %20, %26 in 1 : vector<2x256xf32>, vector<2x256xf32> -> vector<2x512xf32>
    %cst_21 = arith.constant 0.000000e+00 : f32
    %28 = vector.broadcast %cst_21 : f32 to vector<2x512xf32>
    %29 = arith.maximumf %27, %28 : vector<2x512xf32>
    %30 = arith.truncf %29 : vector<2x512xf32> to vector<2x512xbf16>
    %c0_22 = arith.constant 0 : index
    %c0_23 = arith.constant 0 : index
    %31 = vector.load %arg10[%c0_22, %c0_23] : memref<512x2xbf16, #tpu.memory_space<vmem>>, vector<512x2xbf16>
    %cst_24 = arith.constant dense<0.000000e+00> : vector<2x2xf32>
    %32 = tpu.matmul %30, %31, %cst_24 {dimension_numbers = #tpu.dot_dimension_numbers<[1], [0], [0], [1], [0, 0, 1, 1], [], []>} : vector<2x512xbf16>, vector<512x2xbf16>, vector<2x2xf32> -> vector<2x2xf32>
    %c0_25 = arith.constant 0 : index
    %c0_26 = arith.constant 0 : index
    %33 = vector.load %arg11[%c0_25, %c0_26] : memref<1x2xf32, #tpu.memory_space<vmem>>, vector<1x2xf32>
    %34 = vector.broadcast %33 : vector<1x2xf32> to vector<2x2xf32>
    %35 = arith.addf %32, %34 : vector<2x2xf32>
    %c0_27 = arith.constant 0 : index
    %c0_28 = arith.constant 0 : index
    %36 = vector.load %arg12[%c0_27, %c0_28] : memref<2x2xf32, #tpu.memory_space<vmem>>, vector<2x2xf32>
    tpu.vector_store %arg12[%c0_27, %c0_28], %35 {strides = array<i32>} : memref<2x2xf32, #tpu.memory_space<vmem>>, vector<2x2xf32>,
    return
  }
  func.func @transform_0(%arg0: i32) -> (i32, i32) {
    %c0_i32 = arith.constant 0 : i32
    %c0_i32_0 = arith.constant 0 : i32
    return %arg0, %c0_i32 : i32, i32
  }
  func.func @transform_1(%arg0: i32) -> (i32, i32) {
    %c0_i32 = arith.constant 0 : i32
    %c0_i32_0 = arith.constant 0 : i32
    return %arg0, %c0_i32 : i32, i32
  }
  func.func @transform_2(%arg0: i32) -> (i32, i32) {
    %c0_i32 = arith.constant 0 : i32
    %c0_i32_0 = arith.constant 0 : i32
    %c0_i32_1 = arith.constant 0 : i32
    return %c0_i32, %c0_i32_0 : i32, i32
  }
  func.func @transform_3(%arg0: i32) -> (i32, i32) {
    %c0_i32 = arith.constant 0 : i32
    %c0_i32_0 = arith.constant 0 : i32
    %c0_i32_1 = arith.constant 0 : i32
    return %c0_i32, %c0_i32_0 : i32, i32
  }
  func.func @transform_4(%arg0: i32) -> (i32, i32) {
    %c0_i32 = arith.constant 0 : i32
    %c0_i32_0 = arith.constant 0 : i32
    %c0_i32_1 = arith.constant 0 : i32
    return %c0_i32, %c0_i32_0 : i32, i32
  }
  func.func @transform_5(%arg0: i32) -> (i32, i32) {
    %c0_i32 = arith.constant 0 : i32
    %c0_i32_0 = arith.constant 0 : i32
    %c0_i32_1 = arith.constant 0 : i32
    return %c0_i32, %c0_i32_0 : i32, i32
  }
  func.func @transform_6(%arg0: i32) -> (i32, i32) {
    %c0_i32 = arith.constant 0 : i32
    %c0_i32_0 = arith.constant 0 : i32
    %c0_i32_1 = arith.constant 0 : i32
    return %c0_i32, %c0_i32_0 : i32, i32
  }
  func.func @transform_7(%arg0: i32) -> (i32, i32) {
    %c0_i32 = arith.constant 0 : i32
    %c0_i32_0 = arith.constant 0 : i32
    %c0_i32_1 = arith.constant 0 : i32
    return %c0_i32, %c0_i32_0 : i32, i32
  }
  func.func @transform_8(%arg0: i32) -> (i32, i32) {
    %c0_i32 = arith.constant 0 : i32
    %c0_i32_0 = arith.constant 0 : i32
    %c0_i32_1 = arith.constant 0 : i32
    return %c0_i32, %c0_i32_0 : i32, i32
  }
  func.func @transform_9(%arg0: i32) -> (i32, i32) {
    %c0_i32 = arith.constant 0 : i32
    %c0_i32_0 = arith.constant 0 : i32
    %c0_i32_1 = arith.constant 0 : i32
    return %c0_i32, %c0_i32_0 : i32, i32
  }
  func.func @transform_10(%arg0: i32) -> (i32, i32) {
    %c0_i32 = arith.constant 0 : i32
    %c0_i32_0 = arith.constant 0 : i32
    %c0_i32_1 = arith.constant 0 : i32
    return %c0_i32, %c0_i32_0 : i32, i32
  }
  func.func @transform_11(%arg0: i32) -> (i32, i32) {
    %c0_i32 = arith.constant 0 : i32
    %c0_i32_0 = arith.constant 0 : i32
    return %arg0, %c0_i32 : i32, i32
  }
}

</mosaic_0001>

<llo_original>
// kernel: critic_forward.1
$region0: #{critic_forward.1}
  #allocation0 [shape = 'u32[]', space=smem, size = 0x4, offset = 0x4, fixed_abs, tag = 'smem constant byte address 0x4 - core index']
  #allocation1 [shape = 'u32[144,128]{1,0:T(1,128)}', space=vmem, size = 0x12000, scoped, tag = 'internal scratch']
  %s0 = inlined_call_operand.vmem [shape: f32[2,17], index: 0, kind: input, shape index: {}]
  %s1 = inlined_call_operand.hbm [shape: f32[2,6], index: 1, kind: input, shape index: {}]
  %s2 = inlined_call_operand.hbm [shape: bf16[17,512], index: 2, kind: input, shape index: {}]
  %s3 = inlined_call_operand.vmem [shape: bf16[6,512], index: 3, kind: input, shape index: {}]
  %s4 = inlined_call_operand.vmem [shape: f32[1,512], index: 4, kind: input, shape index: {}]
  %s5 = inlined_call_operand.vmem [shape: bf16[256,256], index: 5, kind: input, shape index: {}]
  %s6 = inlined_call_operand.hbm [shape: f32[1,256], index: 6, kind: input, shape index: {}]
  %s7 = inlined_call_operand.hbm [shape: bf16[256,256], index: 7, kind: input, shape index: {}]
  %s8 = inlined_call_operand.vmem [shape: f32[1,256], index: 8, kind: input, shape index: {}]
  %s9 = inlined_call_operand.vmem [shape: bf16[512,2], index: 9, kind: input, shape index: {}]
  %s10 = inlined_call_operand.vmem [shape: f32[1,2], index: 10, kind: input, shape index: {}]
  %s11 = inlined_call_operand.vmem [shape: f32[2,2], index: 11, kind: output, shape index: {}]
  %s12 = sld [smem:[#allocation0]]
  $region70: #{critic_forward.1} parent=0
    _
  %s14 = ssub.s32 1, %s12
  %s15 = scalar_select 0, %s14, %s12
  $region1: #{critic_forward.1} parent=0
    #allocation2 [shape = 'u8[1024]{0}', space=vmem, size = 0x400, scoped, tag = 'input window, operand 1, single buffered']
    #allocation3 [shape = 's32[1]{0}', space=sflag, size = 0x4, scoped, tag = 'scoped memory for critic_forward.1']
    #allocation4 [shape = 'u8[24576]{0}', space=vmem, size = 0x6000, scoped, tag = 'input window, operand 2, single buffered']
    #allocation5 [shape = 's32[1]{0}', space=sflag, size = 0x4, scoped, tag = 'scoped memory for critic_forward.1']
    #allocation6 [shape = 'u8[1024]{0}', space=vmem, size = 0x400, scoped, tag = 'input window, operand 6, single buffered']
    #allocation7 [shape = 'u8[131072]{0}', space=vmem, size = 0x20000, scoped, tag = 'input window, operand 7, single buffered']
    #allocation8 [shape = 's32[1]{0}', space=sflag, size = 0x4, scoped, tag = 'scoped memory for critic_forward.1']
    %16 = vsyncpa [#allocation3], 0
    %17 = vsyncpa [#allocation5], 0
    %18 = vsyncpa [#allocation8], 0
    // Predicated region
    $region2: #{critic_forward.1} parent=1 // pred_check
      _
    $region3: #{critic_forward.1} parent=1 // pred_check_branch
      %20 = sbr.rel (0) target = $region5
    $region4: #{critic_forward.1} parent=1 // pred_region
      _
    $region5: #{critic_forward.1} parent=1 // pred_fallthru
      _
    // Predicated region
    $region6: #{critic_forward.1} parent=1 // pred_check
      _
    $region7: #{critic_forward.1} parent=1 // pred_check_branch
      %22 = sbr.rel (0) target = $region9
    $region8: #{critic_forward.1} parent=1 // pred_region
      %s24 = ssub.s32 32, 32
      %25 = vsyncadd [#allocation3], %s24
      %s27 = sshll.u32 [#allocation2], 4
      %s28 = int_to_ptr.vmem [resolvable:$true] %s27
      %30 = dma.hbm_to_vmem [thread:$0]  %s1, 32, %s28, [#allocation3]
    $region9: #{critic_forward.1} parent=1 // pred_fallthru
      _
    // Predicated region
    $region10: #{critic_forward.1} parent=1 // pred_check
      _
    $region11: #{critic_forward.1} parent=1 // pred_check_branch
      %32 = sbr.rel (0) target = $region13
    $region12: #{critic_forward.1} parent=1 // pred_region
      %s34 = ssub.s32 768, 768
      %35 = vsyncadd [#allocation5], %s34
      %s36 = sshll.u32 [#allocation4], 4
      %s37 = int_to_ptr.vmem [resolvable:$true] %s36
      %42 = dma.hbm_to_vmem [thread:$0]  %s2, 768, %s37, [#allocation5], 256, 256, 16
    $region13: #{critic_forward.1} parent=1 // pred_fallthru
      _
    // Predicated region
    $region14: #{critic_forward.1} parent=1 // pred_check
      _
    $region15: #{critic_forward.1} parent=1 // pred_check_branch
      %44 = sbr.rel (0) target = $region17
    $region16: #{critic_forward.1} parent=1 // pred_region
      _
    $region17: #{critic_forward.1} parent=1 // pred_fallthru
      _
    // Predicated region
    $region18: #{critic_forward.1} parent=1 // pred_check
      _
    $region19: #{critic_forward.1} parent=1 // pred_check_branch
      %46 = sbr.rel (0) target = $region21
    $region20: #{critic_forward.1} parent=1 // pred_region
      _
    $region21: #{critic_forward.1} parent=1 // pred_fallthru
      _
    // Predicated region
    $region22: #{critic_forward.1} parent=1 // pred_check
      _
    $region23: #{critic_forward.1} parent=1 // pred_check_branch
      %48 = sbr.rel (0) target = $region25
    $region24: #{critic_forward.1} parent=1 // pred_region
      _
    $region25: #{critic_forward.1} parent=1 // pred_fallthru
      _
    // Predicated region
    $region26: #{critic_forward.1} parent=1 // pred_check
      _
    $region27: #{critic_forward.1} parent=1 // pred_check_branch
      %50 = sbr.rel (0) target = $region29
    $region28: #{critic_forward.1} parent=1 // pred_region
      %s52 = ssub.s32 32, 32
      %53 = vsyncadd [#allocation5], %s52
      %s55 = sshll.u32 [#allocation6], 4
      %s56 = int_to_ptr.vmem [resolvable:$true] %s55
      %58 = dma.hbm_to_vmem [thread:$0]  %s6, 32, %s56, [#allocation5]
    $region29: #{critic_forward.1} parent=1 // pred_fallthru
      _
    // Predicated region
    $region30: #{critic_forward.1} parent=1 // pred_check
      _
    $region31: #{critic_forward.1} parent=1 // pred_check_branch
      %60 = sbr.rel (0) target = $region33
    $region32: #{critic_forward.1} parent=1 // pred_region
      %s62 = ssub.s32 4096, 4096
      %63 = vsyncadd [#allocation8], %s62
      %s64 = sshll.u32 [#allocation7], 4
      %s65 = int_to_ptr.vmem [resolvable:$true] %s64
      %70 = dma.hbm_to_vmem [thread:$0]  %s7, 4096, %s65, [#allocation8], 128, 128, 8
    $region33: #{critic_forward.1} parent=1 // pred_fallthru
      _
    // Predicated region
    $region34: #{critic_forward.1} parent=1 // pred_check
      _
    $region35: #{critic_forward.1} parent=1 // pred_check_branch
      %72 = sbr.rel (0) target = $region37
    $region36: #{critic_forward.1} parent=1 // pred_region
      _
    $region37: #{critic_forward.1} parent=1 // pred_fallthru
      _
    // Predicated region
    $region38: #{critic_forward.1} parent=1 // pred_check
      _
    $region39: #{critic_forward.1} parent=1 // pred_check_branch
      %74 = sbr.rel (0) target = $region41
    $region40: #{critic_forward.1} parent=1 // pred_region
      _
    $region41: #{critic_forward.1} parent=1 // pred_fallthru
      _
    // Predicated region
    $region42: #{critic_forward.1} parent=1 // pred_check
      _
    $region43: #{critic_forward.1} parent=1 // pred_check_branch
      %76 = sbr.rel (0) target = $region45
    $region44: #{critic_forward.1} parent=1 // pred_region
      _
    $region45: #{critic_forward.1} parent=1 // pred_fallthru
      _
    // Predicated region
    $region46: #{critic_forward.1} parent=1 // pred_check
      _
    $region47: #{critic_forward.1} parent=1 // pred_check_branch
      %78 = sbr.rel (0) target = $region49
    $region48: #{critic_forward.1} parent=1 // pred_region
      %79 = dma.done [#allocation3], 32
    $region49: #{critic_forward.1} parent=1 // pred_fallthru
      _
    // Predicated region
    $region50: #{critic_forward.1} parent=1 // pred_check
      _
    $region51: #{critic_forward.1} parent=1 // pred_check_branch
      %81 = sbr.rel (0) target = $region53
    $region52: #{critic_forward.1} parent=1 // pred_region
      %82 = dma.done [#allocation5], 768
    $region53: #{critic_forward.1} parent=1 // pred_fallthru
      _
    // Predicated region
    $region54: #{critic_forward.1} parent=1 // pred_check
      _
    $region55: #{critic_forward.1} parent=1 // pred_check_branch
      %84 = sbr.rel (0) target = $region57
    $region56: #{critic_forward.1} parent=1 // pred_region
      %85 = dma.done [#allocation5], 32
    $region57: #{critic_forward.1} parent=1 // pred_fallthru
      _
    // Predicated region
    $region58: #{critic_forward.1} parent=1 // pred_check
      _
    $region59: #{critic_forward.1} parent=1 // pred_check_branch
      %87 = sbr.rel (0) target = $region61
    $region60: #{critic_forward.1} parent=1 // pred_region
      %88 = dma.done [#allocation8], 4096
    $region61: #{critic_forward.1} parent=1 // pred_fallthru
      _
    %v90 = vld [vmem:[%s0] sm:$0x3]
    %v91 = vpack.c.bf16 %v90, %v90
    %v92 = vld [vmem:[#allocation2] sm:$0x3]
    %v93 = vpack.c.bf16 %v92, %v92
    %v94 = vld [vmem:[#allocation4] sm:$0xff]
    %v95 = vld [vmem:[#allocation4 + $0x8] sm:$0xff]
    %v96 = vld [vmem:[#allocation4 + $0x10] sm:$0xff]
    %v97 = vld [vmem:[#allocation4 + $0x18] sm:$0xff]
    %v98 = vld [vmem:[#allocation4 + $0x20] sm:$0x11]
    %v99 = vld [vmem:[#allocation4 + $0x28] sm:$0x11]
    %v100 = vld [vmem:[%s3] sm:$0x77]
    %v101 = vld [vmem:[%s3 + $0x8] sm:$0x77]
    %v104 = vunpack.c.l.b16 %v100
    %v105 = vunpack.c.h.b16 %v100
    %v106 = vunpack.c.l.b16 %v101
    %v107 = vunpack.c.h.b16 %v101
    %v108 = vpack.c.b16 %v104, %v104
    %v109 = vpack.c.b16 %v105, %v105
    %v110 = vpack.c.b16 %v106, %v106
    %v111 = vpack.c.b16 %v107, %v107
    %vm112 = vcmask 48128
    %v114 = vsel %vm112, %v93, 0
    %vm116 = vcmask 1042432
    %v118 = vsel %vm116, %v108, 0
    %v121 = vsel %vm116, %v109, 0
    %v124 = vsel %vm116, %v110, 0
    %v127 = vsel %vm116, %v111, 0
    %129 = vmatprep.subr.bf16.mxu0 %v121
    %130 = vmatpush1.bf16.msra.mxu0 %v118
    %131 = vmatprep.subr.bf16.mxu0 0
    %132 = vmatpush1.bf16.msra.mxu0 0
    %133 = vmatprep.subr.bf16.mxu0 0
    %134 = vmatpush1.bf16.msra.mxu0 0
    %135 = vmatprep.subr.bf16.mxu0 0
    %136 = vmatpush1.bf16.msra.mxu0 0
    %137 = vmatprep.subr.bf16.mxu0 0
    %138 = vmatpush1.bf16.msra.mxu0 0
    %139 = vmatprep.subr.bf16.mxu0 0
    %140 = vmatpush1.bf16.msra.mxu0 0
    %141 = vmatprep.subr.bf16.mxu0 0
    %142 = vmatpush1.bf16.msra.mxu0 0
    %143 = vmatprep.subr.bf16.mxu0 0
    %144 = vmatpush1.bf16.msra.mxu0 0
    %145 = vmatprep.subr.bf16.mxu0 0
    %146 = vmatpush1.bf16.msra.mxu0 0
    %147 = vmatprep.subr.bf16.mxu0 0
    %148 = vmatpush1.bf16.msra.mxu0 0
    %149 = vmatprep.subr.bf16.mxu0 0
    %150 = vmatpush1.bf16.msra.mxu0 0
    %151 = vmatprep.subr.bf16.mxu0 0
    %152 = vmatpush1.bf16.msra.mxu0 0
    %153 = vmatprep.subr.bf16.mxu0 0
    %154 = vmatpush1.bf16.msra.mxu0 0
    %155 = vmatprep.subr.bf16.mxu0 0
    %156 = vmatpush1.bf16.msra.mxu0 0
    %157 = vmatprep.subr.bf16.mxu0 0
    %158 = vmatpush1.bf16.msra.mxu0 0
    %159 = vmatprep.subr.bf16.mxu0 0
    %160 = vmatpush1.bf16.msra.mxu0 0
    %161 = vmatprep.mubr.bf16.mxu0 0
    %162 = vmatmul.mubr.bf16.gmra.mrb[0].mxu0 %v114
    %v163 = vpop.f32.mrb[0].mxu0
    %v164 = vadd.f32 0.0, %v163
    %v165 = vpop.f32.mrb[0].mxu0
    %v166 = vadd.f32 0.0, %v165
    %v167 = vpop.f32.mrb[0].mxu0
    %v168 = vpop.f32.mrb[0].mxu0
    %169 = vdwg.mxu0
    %170 = vmatprep.subr.bf16.mxu0 %v127
    %171 = vmatpush1.bf16.msra.mxu0 %v124
    %172 = vmatprep.subr.bf16.mxu0 0
    %173 = vmatpush1.bf16.msra.mxu0 0
    %174 = vmatprep.subr.bf16.mxu0 0
    %175 = vmatpush1.bf16.msra.mxu0 0
    %176 = vmatprep.subr.bf16.mxu0 0
    %177 = vmatpush1.bf16.msra.mxu0 0
    %178 = vmatprep.subr.bf16.mxu0 0
    %179 = vmatpush1.bf16.msra.mxu0 0
    %180 = vmatprep.subr.bf16.mxu0 0
    %181 = vmatpush1.bf16.msra.mxu0 0
    %182 = vmatprep.subr.bf16.mxu0 0
    %183 = vmatpush1.bf16.msra.mxu0 0
    %184 = vmatprep.subr.bf16.mxu0 0
    %185 = vmatpush1.bf16.msra.mxu0 0
    %186 = vmatprep.subr.bf16.mxu0 0
    %187 = vmatpush1.bf16.msra.mxu0 0
    %188 = vmatprep.subr.bf16.mxu0 0
    %189 = vmatpush1.bf16.msra.mxu0 0
    %190 = vmatprep.subr.bf16.mxu0 0
    %191 = vmatpush1.bf16.msra.mxu0 0
    %192 = vmatprep.subr.bf16.mxu0 0
    %193 = vmatpush1.bf16.msra.mxu0 0
    %194 = vmatprep.subr.bf16.mxu0 0
    %195 = vmatpush1.bf16.msra.mxu0 0
    %196 = vmatprep.subr.bf16.mxu0 0
    %197 = vmatpush1.bf16.msra.mxu0 0
    %198 = vmatprep.subr.bf16.mxu0 0
    %199 = vmatpush1.bf16.msra.mxu0 0
    %200 = vmatprep.subr.bf16.mxu0 0
    %201 = vmatpush1.bf16.msra.mxu0 0
    %202 = vmatprep.mubr.bf16.mxu0 0
    %203 = vmatmul.mubr.bf16.gmra.mrb[0].mxu0 %v114
    %v204 = vpop.f32.mrb[0].mxu0
    %v205 = vadd.f32 0.0, %v204
    %v206 = vpop.f32.mrb[0].mxu0
    %v207 = vadd.f32 0.0, %v206
    %v208 = vpop.f32.mrb[0].mxu0
    %v209 = vpop.f32.mrb[0].mxu0
    %210 = vdwg.mxu0
    %v217 = vunpack.c.l.b16 %v94
    %v218 = vunpack.c.h.b16 %v94
    %v219 = vunpack.c.l.b16 %v95
    %v220 = vunpack.c.h.b16 %v95
    %v221 = vunpack.c.l.b16 %v96
    %v222 = vunpack.c.h.b16 %v96
    %v223 = vunpack.c.l.b16 %v97
    %v224 = vunpack.c.h.b16 %v97
    %v225 = vunpack.c.l.b16 %v98
    %v226 = vunpack.c.h.b16 %v98
    %v227 = vunpack.c.l.b16 %v99
    %v228 = vunpack.c.h.b16 %v99
    %v229 = vpack.c.b16 %v221, %v217
    %v230 = vpack.c.b16 %v222, %v218
    %v231 = vpack.c.b16 %v223, %v219
    %v232 = vpack.c.b16 %v224, %v220
    %v233 = vpack.c.b16 %v225, %v225
    %v234 = vpack.c.b16 %v226, %v226
    %v235 = vpack.c.b16 %v227, %v227
    %v236 = vpack.c.b16 %v228, %v228
    %vm241 = vcmask 138240
    %v243 = vsel %vm241, %v91, 0
    %vm245 = vcmask 1040384
    %v246 = vsel 0, 4294967295, 65535
    %v247 = vsel %vm245, %v246, 0
    %v249 = vand.u32 %v233, %v247
    %v252 = vand.u32 %v234, %v247
    %v255 = vand.u32 %v235, %v247
    %v258 = vand.u32 %v236, %v247
    %260 = vmatprep.subr.bf16.mxu0 %v230
    %261 = vmatpush1.bf16.msra.mxu0 %v229
    %262 = vmatprep.subr.bf16.mxu0 %v252
    %263 = vmatpush1.bf16.msra.mxu0 %v249
    %264 = vmatprep.subr.bf16.mxu0 0
    %265 = vmatpush1.bf16.msra.mxu0 0
    %266 = vmatprep.subr.bf16.mxu0 0
    %267 = vmatpush1.bf16.msra.mxu0 0
    %268 = vmatprep.subr.bf16.mxu0 0
    %269 = vmatpush1.bf16.msra.mxu0 0
    %270 = vmatprep.subr.bf16.mxu0 0
    %271 = vmatpush1.bf16.msra.mxu0 0
    %272 = vmatprep.subr.bf16.mxu0 0
    %273 = vmatpush1.bf16.msra.mxu0 0
    %274 = vmatprep.subr.bf16.mxu0 0
    %275 = vmatpush1.bf16.msra.mxu0 0
    %276 = vmatprep.subr.bf16.mxu0 0
    %277 = vmatpush1.bf16.msra.mxu0 0
    %278 = vmatprep.subr.bf16.mxu0 0
    %279 = vmatpush1.bf16.msra.mxu0 0
    %280 = vmatprep.subr.bf16.mxu0 0
    %281 = vmatpush1.bf16.msra.mxu0 0
    %282 = vmatprep.subr.bf16.mxu0 0
    %283 = vmatpush1.bf16.msra.mxu0 0
    %284 = vmatprep.subr.bf16.mxu0 0
    %285 = vmatpush1.bf16.msra.mxu0 0
    %286 = vmatprep.subr.bf16.mxu0 0
    %287 = vmatpush1.bf16.msra.mxu0 0
    %288 = vmatprep.subr.bf16.mxu0 0
    %289 = vmatpush1.bf16.msra.mxu0 0
    %290 = vmatprep.subr.bf16.mxu0 0
    %291 = vmatpush1.bf16.msra.mxu0 0
    %292 = vmatprep.mubr.bf16.mxu0 0
    %293 = vmatmul.mubr.bf16.gmra.mrb[0].mxu0 %v243
    %v294 = vpop.f32.mrb[0].mxu0
    %v295 = vadd.f32 %v164, %v294
    %v296 = vpop.f32.mrb[0].mxu0
    %v297 = vadd.f32 %v166, %v296
    %v298 = vpop.f32.mrb[0].mxu0
    %v299 = vpop.f32.mrb[0].mxu0
    %300 = vdwg.mxu0
    %301 = vmatprep.subr.bf16.mxu0 %v232
    %302 = vmatpush1.bf16.msra.mxu0 %v231
    %303 = vmatprep.subr.bf16.mxu0 %v258
    %304 = vmatpush1.bf16.msra.mxu0 %v255
    %305 = vmatprep.subr.bf16.mxu0 0
    %306 = vmatpush1.bf16.msra.mxu0 0
    %307 = vmatprep.subr.bf16.mxu0 0
    %308 = vmatpush1.bf16.msra.mxu0 0
    %309 = vmatprep.subr.bf16.mxu0 0
    %310 = vmatpush1.bf16.msra.mxu0 0
    %311 = vmatprep.subr.bf16.mxu0 0
    %312 = vmatpush1.bf16.msra.mxu0 0
    %313 = vmatprep.subr.bf16.mxu0 0
    %314 = vmatpush1.bf16.msra.mxu0 0
    %315 = vmatprep.subr.bf16.mxu0 0
    %316 = vmatpush1.bf16.msra.mxu0 0
    %317 = vmatprep.subr.bf16.mxu0 0
    %318 = vmatpush1.bf16.msra.mxu0 0
    %319 = vmatprep.subr.bf16.mxu0 0
    %320 = vmatpush1.bf16.msra.mxu0 0
    %321 = vmatprep.subr.bf16.mxu0 0
    %322 = vmatpush1.bf16.msra.mxu0 0
    %323 = vmatprep.subr.bf16.mxu0 0
    %324 = vmatpush1.bf16.msra.mxu0 0
    %325 = vmatprep.subr.bf16.mxu0 0
    %326 = vmatpush1.bf16.msra.mxu0 0
    %327 = vmatprep.subr.bf16.mxu0 0
    %328 = vmatpush1.bf16.msra.mxu0 0
    %329 = vmatprep.subr.bf16.mxu0 0
    %330 = vmatpush1.bf16.msra.mxu0 0
    %331 = vmatprep.subr.bf16.mxu0 0
    %332 = vmatpush1.bf16.msra.mxu0 0
    %333 = vmatprep.mubr.bf16.mxu0 0
    %334 = vmatmul.mubr.bf16.gmra.mrb[0].mxu0 %v243
    %v335 = vpop.f32.mrb[0].mxu0
    %v336 = vadd.f32 %v205, %v335
    %v337 = vpop.f32.mrb[0].mxu0
    %v338 = vadd.f32 %v207, %v337
    %v339 = vpop.f32.mrb[0].mxu0
    %v340 = vpop.f32.mrb[0].mxu0
    %341 = vdwg.mxu0
    %v342 = vld [vmem:[%s4] sm:$0xf]
    %v344 = vlaneseq
    %v345 = vshrl.u32 %v344, 7
    %v346 = vsub.s32 0, %v345
    %v347 = vrot.slane %v342, %v346
    %v348 = vlaneseq
    %v349 = vshrl.u32 %v348, 7
    %v350 = vsub.s32 1, %v349
    %v351 = vrot.slane %v342, %v350
    %v352 = vlaneseq
    %v353 = vshrl.u32 %v352, 7
    %v354 = vsub.s32 2, %v353
    %v355 = vrot.slane %v342, %v354
    %v356 = vlaneseq
    %v357 = vshrl.u32 %v356, 7
    %v358 = vsub.s32 3, %v357
    %v359 = vrot.slane %v342, %v358
    %v364 = vadd.f32 %v295, %v347
    %v365 = vadd.f32 %v297, %v351
    %v366 = vadd.f32 %v336, %v355
    %v367 = vadd.f32 %v338, %v359
    %v368 = vmax.f32 %v364, 0.0
    %v369 = vmax.f32 %v365, 0.0
    %v370 = vmax.f32 %v366, 0.0
    %v371 = vmax.f32 %v367, 0.0
    %v372 = vpack.c.bf16 %v368, %v368
    %v373 = vpack.c.bf16 %v369, %v369
    %v374 = vpack.c.bf16 %v370, %v370
    %v375 = vpack.c.bf16 %v371, %v371
    %v376 = vld [vmem:[%s5] sm:$0xff]
    %v377 = vld [vmem:[%s5 + $0x8] sm:$0xff]
    %v378 = vld [vmem:[%s5 + $0x10] sm:$0xff]
    %v379 = vld [vmem:[%s5 + $0x18] sm:$0xff]
    %v380 = vld [vmem:[%s5 + $0x20] sm:$0xff]
    %v381 = vld [vmem:[%s5 + $0x28] sm:$0xff]
    %v382 = vld [vmem:[%s5 + $0x30] sm:$0xff]
    %v383 = vld [vmem:[%s5 + $0x38] sm:$0xff]
    %v384 = vld [vmem:[%s5 + $0x40] sm:$0xff]
    %v385 = vld [vmem:[%s5 + $0x48] sm:$0xff]
    %v386 = vld [vmem:[%s5 + $0x50] sm:$0xff]
    %v387 = vld [vmem:[%s5 + $0x58] sm:$0xff]
    %v388 = vld [vmem:[%s5 + $0x60] sm:$0xff]
    %v389 = vld [vmem:[%s5 + $0x68] sm:$0xff]
    %v390 = vld [vmem:[%s5 + $0x70] sm:$0xff]
    %v391 = vld [vmem:[%s5 + $0x78] sm:$0xff]
    %v392 = vld [vmem:[%s5 + $0x80] sm:$0xff]
    %v393 = vld [vmem:[%s5 + $0x88] sm:$0xff]
    %v394 = vld [vmem:[%s5 + $0x90] sm:$0xff]
    %v395 = vld [vmem:[%s5 + $0x98] sm:$0xff]
    %v396 = vld [vmem:[%s5 + $0xa0] sm:$0xff]
    %v397 = vld [vmem:[%s5 + $0xa8] sm:$0xff]
    %v398 = vld [vmem:[%s5 + $0xb0] sm:$0xff]
    %v399 = vld [vmem:[%s5 + $0xb8] sm:$0xff]
    %v400 = vld [vmem:[%s5 + $0xc0] sm:$0xff]
    %v401 = vld [vmem:[%s5 + $0xc8] sm:$0xff]
    %v402 = vld [vmem:[%s5 + $0xd0] sm:$0xff]
    %v403 = vld [vmem:[%s5 + $0xd8] sm:$0xff]
    %v404 = vld [vmem:[%s5 + $0xe0] sm:$0xff]
    %v405 = vld [vmem:[%s5 + $0xe8] sm:$0xff]
    %v406 = vld [vmem:[%s5 + $0xf0] sm:$0xff]
    %v407 = vld [vmem:[%s5 + $0xf8] sm:$0xff]
    %v408 = vld [vmem:[#allocation6] sm:$0x3]
    %v410 = vlaneseq
    %v411 = vshrl.u32 %v410, 7
    %v412 = vsub.s32 0, %v411
    %v413 = vrot.slane %v408, %v412
    %v414 = vlaneseq
    %v415 = vshrl.u32 %v414, 7
    %v416 = vsub.s32 1, %v415
    %v417 = vrot.slane %v408, %v416
    %v452 = vunpack.c.l.b16 %v376
    %v453 = vunpack.c.h.b16 %v376
    %v454 = vunpack.c.l.b16 %v377
    %v455 = vunpack.c.h.b16 %v377
    %v456 = vunpack.c.l.b16 %v378
    %v457 = vunpack.c.h.b16 %v378
    %v458 = vunpack.c.l.b16 %v379
    %v459 = vunpack.c.h.b16 %v379
    %v460 = vunpack.c.l.b16 %v380
    %v461 = vunpack.c.h.b16 %v380
    %v462 = vunpack.c.l.b16 %v381
    %v463 = vunpack.c.h.b16 %v381
    %v464 = vunpack.c.l.b16 %v382
    %v465 = vunpack.c.h.b16 %v382
    %v466 = vunpack.c.l.b16 %v383
    %v467 = vunpack.c.h.b16 %v383
    %v468 = vunpack.c.l.b16 %v384
    %v469 = vunpack.c.h.b16 %v384
    %v470 = vunpack.c.l.b16 %v385
    %v471 = vunpack.c.h.b16 %v385
    %v472 = vunpack.c.l.b16 %v386
    %v473 = vunpack.c.h.b16 %v386
    %v474 = vunpack.c.l.b16 %v387
    %v475 = vunpack.c.h.b16 %v387
    %v476 = vunpack.c.l.b16 %v388
    %v477 = vunpack.c.h.b16 %v388
    %v478 = vunpack.c.l.b16 %v389
    %v479 = vunpack.c.h.b16 %v389
    %v480 = vunpack.c.l.b16 %v390
    %v481 = vunpack.c.h.b16 %v390
    %v482 = vunpack.c.l.b16 %v391
    %v483 = vunpack.c.h.b16 %v391
    %v484 = vunpack.c.l.b16 %v392
    %v485 = vunpack.c.h.b16 %v392
    %v486 = vunpack.c.l.b16 %v393
    %v487 = vunpack.c.h.b16 %v393
    %v488 = vunpack.c.l.b16 %v394
    %v489 = vunpack.c.h.b16 %v394
    %v490 = vunpack.c.l.b16 %v395
    %v491 = vunpack.c.h.b16 %v395
    %v492 = vunpack.c.l.b16 %v396
    %v493 = vunpack.c.h.b16 %v396
    %v494 = vunpack.c.l.b16 %v397
    %v495 = vunpack.c.h.b16 %v397
    %v496 = vunpack.c.l.b16 %v398
    %v497 = vunpack.c.h.b16 %v398
    %v498 = vunpack.c.l.b16 %v399
    %v499 = vunpack.c.h.b16 %v399
    %v500 = vunpack.c.l.b16 %v400
    %v501 = vunpack.c.h.b16 %v400
    %v502 = vunpack.c.l.b16 %v401
    %v503 = vunpack.c.h.b16 %v401
    %v504 = vunpack.c.l.b16 %v402
    %v505 = vunpack.c.h.b16 %v402
    %v506 = vunpack.c.l.b16 %v403
    %v507 = vunpack.c.h.b16 %v403
    %v508 = vunpack.c.l.b16 %v404
    %v509 = vunpack.c.h.b16 %v404
    %v510 = vunpack.c.l.b16 %v405
    %v511 = vunpack.c.h.b16 %v405
    %v512 = vunpack.c.l.b16 %v406
    %v513 = vunpack.c.h.b16 %v406
    %v514 = vunpack.c.l.b16 %v407
    %v515 = vunpack.c.h.b16 %v407
    %v516 = vpack.c.b16 %v454, %v452
    %v517 = vpack.c.b16 %v455, %v453
    %v518 = vpack.c.b16 %v458, %v456
    %v519 = vpack.c.b16 %v459, %v457
    %v520 = vpack.c.b16 %v462, %v460
    %v521 = vpack.c.b16 %v463, %v461
    %v522 = vpack.c.b16 %v466, %v464
    %v523 = vpack.c.b16 %v467, %v465
    %v524 = vpack.c.b16 %v470, %v468
    %v525 = vpack.c.b16 %v471, %v469
    %v526 = vpack.c.b16 %v474, %v472
    %v527 = vpack.c.b16 %v475, %v473
    %v528 = vpack.c.b16 %v478, %v476
    %v529 = vpack.c.b16 %v479, %v477
    %v530 = vpack.c.b16 %v482, %v480
    %v531 = vpack.c.b16 %v483, %v481
    %v532 = vpack.c.b16 %v486, %v484
    %v533 = vpack.c.b16 %v487, %v485
    %v534 = vpack.c.b16 %v490, %v488
    %v535 = vpack.c.b16 %v491, %v489
    %v536 = vpack.c.b16 %v494, %v492
    %v537 = vpack.c.b16 %v495, %v493
    %v538 = vpack.c.b16 %v498, %v496
    %v539 = vpack.c.b16 %v499, %v497
    %v540 = vpack.c.b16 %v502, %v500
    %v541 = vpack.c.b16 %v503, %v501
    %v542 = vpack.c.b16 %v506, %v504
    %v543 = vpack.c.b16 %v507, %v505
    %v544 = vpack.c.b16 %v510, %v508
    %v545 = vpack.c.b16 %v511, %v509
    %v546 = vpack.c.b16 %v514, %v512
    %v547 = vpack.c.b16 %v515, %v513
    %580 = vmatprep.subr.bf16.mxu0 %v517
    %581 = vmatpush1.bf16.msra.mxu0 %v516
    %582 = vmatprep.subr.bf16.mxu0 %v519
    %583 = vmatpush1.bf16.msra.mxu0 %v518
    %584 = vmatprep.subr.bf16.mxu0 %v521
    %585 = vmatpush1.bf16.msra.mxu0 %v520
    %586 = vmatprep.subr.bf16.mxu0 %v523
    %587 = vmatpush1.bf16.msra.mxu0 %v522
    %588 = vmatprep.subr.bf16.mxu0 %v525
    %589 = vmatpush1.bf16.msra.mxu0 %v524
    %590 = vmatprep.subr.bf16.mxu0 %v527
    %591 = vmatpush1.bf16.msra.mxu0 %v526
    %592 = vmatprep.subr.bf16.mxu0 %v529
    %593 = vmatpush1.bf16.msra.mxu0 %v528
    %594 = vmatprep.subr.bf16.mxu0 %v531
    %595 = vmatpush1.bf16.msra.mxu0 %v530
    %596 = vmatprep.subr.bf16.mxu0 %v533
    %597 = vmatpush1.bf16.msra.mxu0 %v532
    %598 = vmatprep.subr.bf16.mxu0 %v535
    %599 = vmatpush1.bf16.msra.mxu0 %v534
    %600 = vmatprep.subr.bf16.mxu0 %v537
    %601 = vmatpush1.bf16.msra.mxu0 %v536
    %602 = vmatprep.subr.bf16.mxu0 %v539
    %603 = vmatpush1.bf16.msra.mxu0 %v538
    %604 = vmatprep.subr.bf16.mxu0 %v541
    %605 = vmatpush1.bf16.msra.mxu0 %v540
    %606 = vmatprep.subr.bf16.mxu0 %v543
    %607 = vmatpush1.bf16.msra.mxu0 %v542
    %608 = vmatprep.subr.bf16.mxu0 %v545
    %609 = vmatpush1.bf16.msra.mxu0 %v544
    %610 = vmatprep.subr.bf16.mxu0 %v547
    %611 = vmatpush1.bf16.msra.mxu0 %v546
    %612 = vmatprep.mubr.bf16.mxu0 %v373
    %613 = vmatmul.mubr.bf16.gmra.mrb[0].mxu0 %v372
    %v614 = vpop.f32.mrb[0].mxu0
    %v615 = vadd.f32 %v413, %v614
    %v616 = vpop.f32.mrb[0].mxu0
    %v617 = vadd.f32 %v417, %v616
    %v618 = vpop.f32.mrb[0].mxu0
    %v619 = vpop.f32.mrb[0].mxu0
    %620 = vdwg.mxu0
    %v621 = vld [vmem:[#allocation7] sm:$0xff]
    %v622 = vld [vmem:[#allocation7 + $0x8] sm:$0xff]
    %v623 = vld [vmem:[#allocation7 + $0x10] sm:$0xff]
    %v624 = vld [vmem:[#allocation7 + $0x18] sm:$0xff]
    %v625 = vld [vmem:[#allocation7 + $0x20] sm:$0xff]
    %v626 = vld [vmem:[#allocation7 + $0x28] sm:$0xff]
    %v627 = vld [vmem:[#allocation7 + $0x30] sm:$0xff]
    %v628 = vld [vmem:[#allocation7 + $0x38] sm:$0xff]
    %v629 = vld [vmem:[#allocation7 + $0x40] sm:$0xff]
    %v630 = vld [vmem:[#allocation7 + $0x48] sm:$0xff]
    %v631 = vld [vmem:[#allocation7 + $0x50] sm:$0xff]
    %v632 = vld [vmem:[#allocation7 + $0x58] sm:$0xff]
    %v633 = vld [vmem:[#allocation7 + $0x60] sm:$0xff]
    %v634 = vld [vmem:[#allocation7 + $0x68] sm:$0xff]
    %v635 = vld [vmem:[#allocation7 + $0x70] sm:$0xff]
    %v636 = vld [vmem:[#allocation7 + $0x78] sm:$0xff]
    %v637 = vld [vmem:[#allocation7 + $0x80] sm:$0xff]
    %v638 = vld [vmem:[#allocation7 + $0x88] sm:$0xff]
    %v639 = vld [vmem:[#allocation7 + $0x90] sm:$0xff]
    %v640 = vld [vmem:[#allocation7 + $0x98] sm:$0xff]
    %v641 = vld [vmem:[#allocation7 + $0xa0] sm:$0xff]
    %v642 = vld [vmem:[#allocation7 + $0xa8] sm:$0xff]
    %v643 = vld [vmem:[#allocation7 + $0xb0] sm:$0xff]
    %v644 = vld [vmem:[#allocation7 + $0xb8] sm:$0xff]
    %v645 = vld [vmem:[#allocation7 + $0xc0] sm:$0xff]
    %v646 = vld [vmem:[#allocation7 + $0xc8] sm:$0xff]
    %v647 = vld [vmem:[#allocation7 + $0xd0] sm:$0xff]
    %v648 = vld [vmem:[#allocation7 + $0xd8] sm:$0xff]
    %v649 = vld [vmem:[#allocation7 + $0xe0] sm:$0xff]
    %v650 = vld [vmem:[#allocation7 + $0xe8] sm:$0xff]
    %v651 = vld [vmem:[#allocation7 + $0xf0] sm:$0xff]
    %v652 = vld [vmem:[#allocation7 + $0xf8] sm:$0xff]
    %v653 = vld [vmem:[%s8] sm:$0x3]
    %v655 = vlaneseq
    %v656 = vshrl.u32 %v655, 7
    %v657 = vsub.s32 0, %v656
    %v658 = vrot.slane %v653, %v657
    %v659 = vlaneseq
    %v660 = vshrl.u32 %v659, 7
    %v661 = vsub.s32 1, %v660
    %v662 = vrot.slane %v653, %v661
    %v697 = vunpack.c.l.b16 %v621
    %v698 = vunpack.c.h.b16 %v621
    %v699 = vunpack.c.l.b16 %v622
    %v700 = vunpack.c.h.b16 %v622
    %v701 = vunpack.c.l.b16 %v623
    %v702 = vunpack.c.h.b16 %v623
    %v703 = vunpack.c.l.b16 %v624
    %v704 = vunpack.c.h.b16 %v624
    %v705 = vunpack.c.l.b16 %v625
    %v706 = vunpack.c.h.b16 %v625
    %v707 = vunpack.c.l.b16 %v626
    %v708 = vunpack.c.h.b16 %v626
    %v709 = vunpack.c.l.b16 %v627
    %v710 = vunpack.c.h.b16 %v627
    %v711 = vunpack.c.l.b16 %v628
    %v712 = vunpack.c.h.b16 %v628
    %v713 = vunpack.c.l.b16 %v629
    %v714 = vunpack.c.h.b16 %v629
    %v715 = vunpack.c.l.b16 %v630
    %v716 = vunpack.c.h.b16 %v630
    %v717 = vunpack.c.l.b16 %v631
    %v718 = vunpack.c.h.b16 %v631
    %v719 = vunpack.c.l.b16 %v632
    %v720 = vunpack.c.h.b16 %v632
    %v721 = vunpack.c.l.b16 %v633
    %v722 = vunpack.c.h.b16 %v633
    %v723 = vunpack.c.l.b16 %v634
    %v724 = vunpack.c.h.b16 %v634
    %v725 = vunpack.c.l.b16 %v635
    %v726 = vunpack.c.h.b16 %v635
    %v727 = vunpack.c.l.b16 %v636
    %v728 = vunpack.c.h.b16 %v636
    %v729 = vunpack.c.l.b16 %v637
    %v730 = vunpack.c.h.b16 %v637
    %v731 = vunpack.c.l.b16 %v638
    %v732 = vunpack.c.h.b16 %v638
    %v733 = vunpack.c.l.b16 %v639
    %v734 = vunpack.c.h.b16 %v639
    %v735 = vunpack.c.l.b16 %v640
    %v736 = vunpack.c.h.b16 %v640
    %v737 = vunpack.c.l.b16 %v641
    %v738 = vunpack.c.h.b16 %v641
    %v739 = vunpack.c.l.b16 %v642
    %v740 = vunpack.c.h.b16 %v642
    %v741 = vunpack.c.l.b16 %v643
    %v742 = vunpack.c.h.b16 %v643
    %v743 = vunpack.c.l.b16 %v644
    %v744 = vunpack.c.h.b16 %v644
    %v745 = vunpack.c.l.b16 %v645
    %v746 = vunpack.c.h.b16 %v645
    %v747 = vunpack.c.l.b16 %v646
    %v748 = vunpack.c.h.b16 %v646
    %v749 = vunpack.c.l.b16 %v647
    %v750 = vunpack.c.h.b16 %v647
    %v751 = vunpack.c.l.b16 %v648
    %v752 = vunpack.c.h.b16 %v648
    %v753 = vunpack.c.l.b16 %v649
    %v754 = vunpack.c.h.b16 %v649
    %v755 = vunpack.c.l.b16 %v650
    %v756 = vunpack.c.h.b16 %v650
    %v757 = vunpack.c.l.b16 %v651
    %v758 = vunpack.c.h.b16 %v651
    %v759 = vunpack.c.l.b16 %v652
    %v760 = vunpack.c.h.b16 %v652
    %v761 = vpack.c.b16 %v699, %v697
    %v762 = vpack.c.b16 %v700, %v698
    %v763 = vpack.c.b16 %v703, %v701
    %v764 = vpack.c.b16 %v704, %v702
    %v765 = vpack.c.b16 %v707, %v705
    %v766 = vpack.c.b16 %v708, %v706
    %v767 = vpack.c.b16 %v711, %v709
    %v768 = vpack.c.b16 %v712, %v710
    %v769 = vpack.c.b16 %v715, %v713
    %v770 = vpack.c.b16 %v716, %v714
    %v771 = vpack.c.b16 %v719, %v717
    %v772 = vpack.c.b16 %v720, %v718
    %v773 = vpack.c.b16 %v723, %v721
    %v774 = vpack.c.b16 %v724, %v722
    %v775 = vpack.c.b16 %v727, %v725
    %v776 = vpack.c.b16 %v728, %v726
    %v777 = vpack.c.b16 %v731, %v729
    %v778 = vpack.c.b16 %v732, %v730
    %v779 = vpack.c.b16 %v735, %v733
    %v780 = vpack.c.b16 %v736, %v734
    %v781 = vpack.c.b16 %v739, %v737
    %v782 = vpack.c.b16 %v740, %v738
    %v783 = vpack.c.b16 %v743, %v741
    %v784 = vpack.c.b16 %v744, %v742
    %v785 = vpack.c.b16 %v747, %v745
    %v786 = vpack.c.b16 %v748, %v746
    %v787 = vpack.c.b16 %v751, %v749
    %v788 = vpack.c.b16 %v752, %v750
    %v789 = vpack.c.b16 %v755, %v753
    %v790 = vpack.c.b16 %v756, %v754
    %v791 = vpack.c.b16 %v759, %v757
    %v792 = vpack.c.b16 %v760, %v758
    %825 = vmatprep.subr.bf16.mxu0 %v762
    %826 = vmatpush1.bf16.msra.mxu0 %v761
    %827 = vmatprep.subr.bf16.mxu0 %v764
    %828 = vmatpush1.bf16.msra.mxu0 %v763
    %829 = vmatprep.subr.bf16.mxu0 %v766
    %830 = vmatpush1.bf16.msra.mxu0 %v765
    %831 = vmatprep.subr.bf16.mxu0 %v768
    %832 = vmatpush1.bf16.msra.mxu0 %v767
    %833 = vmatprep.subr.bf16.mxu0 %v770
    %834 = vmatpush1.bf16.msra.mxu0 %v769
    %835 = vmatprep.subr.bf16.mxu0 %v772
    %836 = vmatpush1.bf16.msra.mxu0 %v771
    %837 = vmatprep.subr.bf16.mxu0 %v774
    %838 = vmatpush1.bf16.msra.mxu0 %v773
    %839 = vmatprep.subr.bf16.mxu0 %v776
    %840 = vmatpush1.bf16.msra.mxu0 %v775
    %841 = vmatprep.subr.bf16.mxu0 %v778
    %842 = vmatpush1.bf16.msra.mxu0 %v777
    %843 = vmatprep.subr.bf16.mxu0 %v780
    %844 = vmatpush1.bf16.msra.mxu0 %v779
    %845 = vmatprep.subr.bf16.mxu0 %v782
    %846 = vmatpush1.bf16.msra.mxu0 %v781
    %847 = vmatprep.subr.bf16.mxu0 %v784
    %848 = vmatpush1.bf16.msra.mxu0 %v783
    %849 = vmatprep.subr.bf16.mxu0 %v786
    %850 = vmatpush1.bf16.msra.mxu0 %v785
    %851 = vmatprep.subr.bf16.mxu0 %v788
    %852 = vmatpush1.bf16.msra.mxu0 %v787
    %853 = vmatprep.subr.bf16.mxu0 %v790
    %854 = vmatpush1.bf16.msra.mxu0 %v789
    %855 = vmatprep.subr.bf16.mxu0 %v792
    %856 = vmatpush1.bf16.msra.mxu0 %v791
    %857 = vmatprep.mubr.bf16.mxu0 %v375
    %858 = vmatmul.mubr.bf16.gmra.mrb[0].mxu0 %v374
    %v859 = vpop.f32.mrb[0].mxu0
    %v860 = vadd.f32 %v658, %v859
    %v861 = vpop.f32.mrb[0].mxu0
    %v862 = vadd.f32 %v662, %v861
    %v863 = vpop.f32.mrb[0].mxu0
    %v864 = vpop.f32.mrb[0].mxu0
    %865 = vdwg.mxu0
    %v866 = vmax.f32 %v615, 0.0
    %v867 = vmax.f32 %v617, 0.0
    %v868 = vmax.f32 %v860, 0.0
    %v869 = vmax.f32 %v862, 0.0
    %v870 = vpack.c.bf16 %v866, %v866
    %v871 = vpack.c.bf16 %v867, %v867
    %v872 = vpack.c.bf16 %v868, %v868
    %v873 = vpack.c.bf16 %v869, %v869
    %v874 = vld [vmem:[%s9] sm:$0xf]
    %v875 = vld [vmem:[%s9 + $0x4] sm:$0xf]
    %v876 = vld [vmem:[%s9 + $0x8] sm:$0xf]
    %v877 = vld [vmem:[%s9 + $0xc] sm:$0xf]
    %v878 = vld [vmem:[%s9 + $0x10] sm:$0xf]
    %v879 = vld [vmem:[%s9 + $0x14] sm:$0xf]
    %v880 = vld [vmem:[%s9 + $0x18] sm:$0xf]
    %v881 = vld [vmem:[%s9 + $0x1c] sm:$0xf]
    %v882 = vld [vmem:[%s9 + $0x20] sm:$0xf]
    %v883 = vld [vmem:[%s9 + $0x24] sm:$0xf]
    %v884 = vld [vmem:[%s9 + $0x28] sm:$0xf]
    %v885 = vld [vmem:[%s9 + $0x2c] sm:$0xf]
    %v886 = vld [vmem:[%s9 + $0x30] sm:$0xf]
    %v887 = vld [vmem:[%s9 + $0x34] sm:$0xf]
    %v888 = vld [vmem:[%s9 + $0x38] sm:$0xf]
    %v889 = vld [vmem:[%s9 + $0x3c] sm:$0xf]
    %v890 = vld [vmem:[%s9 + $0x40] sm:$0xf]
    %v891 = vld [vmem:[%s9 + $0x44] sm:$0xf]
    %v892 = vld [vmem:[%s9 + $0x48] sm:$0xf]
    %v893 = vld [vmem:[%s9 + $0x4c] sm:$0xf]
    %v894 = vld [vmem:[%s9 + $0x50] sm:$0xf]
    %v895 = vld [vmem:[%s9 + $0x54] sm:$0xf]
    %v896 = vld [vmem:[%s9 + $0x58] sm:$0xf]
    %v897 = vld [vmem:[%s9 + $0x5c] sm:$0xf]
    %v898 = vld [vmem:[%s9 + $0x60] sm:$0xf]
    %v899 = vld [vmem:[%s9 + $0x64] sm:$0xf]
    %v900 = vld [vmem:[%s9 + $0x68] sm:$0xf]
    %v901 = vld [vmem:[%s9 + $0x6c] sm:$0xf]
    %v902 = vld [vmem:[%s9 + $0x70] sm:$0xf]
    %v903 = vld [vmem:[%s9 + $0x74] sm:$0xf]
    %v904 = vld [vmem:[%s9 + $0x78] sm:$0xf]
    %v905 = vld [vmem:[%s9 + $0x7c] sm:$0xf]
    %v906 = vld [vmem:[%s9 + $0x80] sm:$0xf]
    %v907 = vld [vmem:[%s9 + $0x84] sm:$0xf]
    %v908 = vld [vmem:[%s9 + $0x88] sm:$0xf]
    %v909 = vld [vmem:[%s9 + $0x8c] sm:$0xf]
    %v910 = vld [vmem:[%s9 + $0x90] sm:$0xf]
    %v911 = vld [vmem:[%s9 + $0x94] sm:$0xf]
    %v912 = vld [vmem:[%s9 + $0x98] sm:$0xf]
    %v913 = vld [vmem:[%s9 + $0x9c] sm:$0xf]
    %v914 = vld [vmem:[%s9 + $0xa0] sm:$0xf]
    %v915 = vld [vmem:[%s9 + $0xa4] sm:$0xf]
    %v916 = vld [vmem:[%s9 + $0xa8] sm:$0xf]
    %v917 = vld [vmem:[%s9 + $0xac] sm:$0xf]
    %v918 = vld [vmem:[%s9 + $0xb0] sm:$0xf]
    %v919 = vld [vmem:[%s9 + $0xb4] sm:$0xf]
    %v920 = vld [vmem:[%s9 + $0xb8] sm:$0xf]
    %v921 = vld [vmem:[%s9 + $0xbc] sm:$0xf]
    %v922 = vld [vmem:[%s9 + $0xc0] sm:$0xf]
    %v923 = vld [vmem:[%s9 + $0xc4] sm:$0xf]
    %v924 = vld [vmem:[%s9 + $0xc8] sm:$0xf]
    %v925 = vld [vmem:[%s9 + $0xcc] sm:$0xf]
    %v926 = vld [vmem:[%s9 + $0xd0] sm:$0xf]
    %v927 = vld [vmem:[%s9 + $0xd4] sm:$0xf]
    %v928 = vld [vmem:[%s9 + $0xd8] sm:$0xf]
    %v929 = vld [vmem:[%s9 + $0xdc] sm:$0xf]
    %v930 = vld [vmem:[%s9 + $0xe0] sm:$0xf]
    %v931 = vld [vmem:[%s9 + $0xe4] sm:$0xf]
    %v932 = vld [vmem:[%s9 + $0xe8] sm:$0xf]
    %v933 = vld [vmem:[%s9 + $0xec] sm:$0xf]
    %v934 = vld [vmem:[%s9 + $0xf0] sm:$0xf]
    %v935 = vld [vmem:[%s9 + $0xf4] sm:$0xf]
    %v936 = vld [vmem:[%s9 + $0xf8] sm:$0xf]
    %v937 = vld [vmem:[%s9 + $0xfc] sm:$0xf]
    %v938 = vld [vmem:[%s10] sm:$0x1]
    %v940 = vlaneseq
    %v941 = vshrl.u32 %v940, 7
    %v942 = vsub.s32 0, %v941
    %v943 = vrot.slane %v938, %v942
    %v1009 = vunpack.c.l.b16 %v874
    %v1010 = vunpack.c.l.b16 %v875
    %v1011 = vunpack.c.l.b16 %v876
    %v1012 = vunpack.c.l.b16 %v877
    %v1013 = vunpack.c.l.b16 %v878
    %v1014 = vunpack.c.l.b16 %v879
    %v1015 = vunpack.c.l.b16 %v880
    %v1016 = vunpack.c.l.b16 %v881
    %v1017 = vunpack.c.l.b16 %v882
    %v1018 = vunpack.c.l.b16 %v883
    %v1019 = vunpack.c.l.b16 %v884
    %v1020 = vunpack.c.l.b16 %v885
    %v1021 = vunpack.c.l.b16 %v886
    %v1022 = vunpack.c.l.b16 %v887
    %v1023 = vunpack.c.l.b16 %v888
    %v1024 = vunpack.c.l.b16 %v889
    %v1025 = vunpack.c.l.b16 %v890
    %v1026 = vunpack.c.l.b16 %v891
    %v1027 = vunpack.c.l.b16 %v892
    %v1028 = vunpack.c.l.b16 %v893
    %v1029 = vunpack.c.l.b16 %v894
    %v1030 = vunpack.c.l.b16 %v895
    %v1031 = vunpack.c.l.b16 %v896
    %v1032 = vunpack.c.l.b16 %v897
    %v1033 = vunpack.c.l.b16 %v898
    %v1034 = vunpack.c.l.b16 %v899
    %v1035 = vunpack.c.l.b16 %v900
    %v1036 = vunpack.c.l.b16 %v901
    %v1037 = vunpack.c.l.b16 %v902
    %v1038 = vunpack.c.l.b16 %v903
    %v1039 = vunpack.c.l.b16 %v904
    %v1040 = vunpack.c.l.b16 %v905
    %v1041 = vunpack.c.l.b16 %v906
    %v1042 = vunpack.c.l.b16 %v907
    %v1043 = vunpack.c.l.b16 %v908
    %v1044 = vunpack.c.l.b16 %v909
    %v1045 = vunpack.c.l.b16 %v910
    %v1046 = vunpack.c.l.b16 %v911
    %v1047 = vunpack.c.l.b16 %v912
    %v1048 = vunpack.c.l.b16 %v913
    %v1049 = vunpack.c.l.b16 %v914
    %v1050 = vunpack.c.l.b16 %v915
    %v1051 = vunpack.c.l.b16 %v916
    %v1052 = vunpack.c.l.b16 %v917
    %v1053 = vunpack.c.l.b16 %v918
    %v1054 = vunpack.c.l.b16 %v919
    %v1055 = vunpack.c.l.b16 %v920
    %v1056 = vunpack.c.l.b16 %v921
    %v1057 = vunpack.c.l.b16 %v922
    %v1058 = vunpack.c.l.b16 %v923
    %v1059 = vunpack.c.l.b16 %v924
    %v1060 = vunpack.c.l.b16 %v925
    %v1061 = vunpack.c.l.b16 %v926
    %v1062 = vunpack.c.l.b16 %v927
    %v1063 = vunpack.c.l.b16 %v928
    %v1064 = vunpack.c.l.b16 %v929
    %v1065 = vunpack.c.l.b16 %v930
    %v1066 = vunpack.c.l.b16 %v931
    %v1067 = vunpack.c.l.b16 %v932
    %v1068 = vunpack.c.l.b16 %v933
    %v1069 = vunpack.c.l.b16 %v934
    %v1070 = vunpack.c.l.b16 %v935
    %v1071 = vunpack.c.l.b16 %v936
    %v1072 = vunpack.c.l.b16 %v937
    %v1073 = vpack.c.b16 %v1010, %v1009
    %v1074 = vpack.c.b16 %v1012, %v1011
    %v1075 = vpack.c.b16 %v1014, %v1013
    %v1076 = vpack.c.b16 %v1016, %v1015
    %v1077 = vpack.c.b16 %v1018, %v1017
    %v1078 = vpack.c.b16 %v1020, %v1019
    %v1079 = vpack.c.b16 %v1022, %v1021
    %v1080 = vpack.c.b16 %v1024, %v1023
    %v1081 = vpack.c.b16 %v1026, %v1025
    %v1082 = vpack.c.b16 %v1028, %v1027
    %v1083 = vpack.c.b16 %v1030, %v1029
    %v1084 = vpack.c.b16 %v1032, %v1031
    %v1085 = vpack.c.b16 %v1034, %v1033
    %v1086 = vpack.c.b16 %v1036, %v1035
    %v1087 = vpack.c.b16 %v1038, %v1037
    %v1088 = vpack.c.b16 %v1040, %v1039
    %v1089 = vpack.c.b16 %v1042, %v1041
    %v1090 = vpack.c.b16 %v1044, %v1043
    %v1091 = vpack.c.b16 %v1046, %v1045
    %v1092 = vpack.c.b16 %v1048, %v1047
    %v1093 = vpack.c.b16 %v1050, %v1049
    %v1094 = vpack.c.b16 %v1052, %v1051
    %v1095 = vpack.c.b16 %v1054, %v1053
    %v1096 = vpack.c.b16 %v1056, %v1055
    %v1097 = vpack.c.b16 %v1058, %v1057
    %v1098 = vpack.c.b16 %v1060, %v1059
    %v1099 = vpack.c.b16 %v1062, %v1061
    %v1100 = vpack.c.b16 %v1064, %v1063
    %v1101 = vpack.c.b16 %v1066, %v1065
    %v1102 = vpack.c.b16 %v1068, %v1067
    %v1103 = vpack.c.b16 %v1070, %v1069
    %v1104 = vpack.c.b16 %v1072, %v1071
    %1137 = vmatprep.subr.bf16.mxu0 0
    %1138 = vmatpush1.bf16.msra.mxu0 %v1073
    %1139 = vmatprep.subr.bf16.mxu0 0
    %1140 = vmatpush1.bf16.msra.mxu0 %v1074
    %1141 = vmatprep.subr.bf16.mxu0 0
    %1142 = vmatpush1.bf16.msra.mxu0 %v1075
    %1143 = vmatprep.subr.bf16.mxu0 0
    %1144 = vmatpush1.bf16.msra.mxu0 %v1076
    %1145 = vmatprep.subr.bf16.mxu0 0
    %1146 = vmatpush1.bf16.msra.mxu0 %v1077
    %1147 = vmatprep.subr.bf16.mxu0 0
    %1148 = vmatpush1.bf16.msra.mxu0 %v1078
    %1149 = vmatprep.subr.bf16.mxu0 0
    %1150 = vmatpush1.bf16.msra.mxu0 %v1079
    %1151 = vmatprep.subr.bf16.mxu0 0
    %1152 = vmatpush1.bf16.msra.mxu0 %v1080
    %1153 = vmatprep.subr.bf16.mxu0 0
    %1154 = vmatpush1.bf16.msra.mxu0 %v1081
    %1155 = vmatprep.subr.bf16.mxu0 0
    %1156 = vmatpush1.bf16.msra.mxu0 %v1082
    %1157 = vmatprep.subr.bf16.mxu0 0
    %1158 = vmatpush1.bf16.msra.mxu0 %v1083
    %1159 = vmatprep.subr.bf16.mxu0 0
    %1160 = vmatpush1.bf16.msra.mxu0 %v1084
    %1161 = vmatprep.subr.bf16.mxu0 0
    %1162 = vmatpush1.bf16.msra.mxu0 %v1085
    %1163 = vmatprep.subr.bf16.mxu0 0
    %1164 = vmatpush1.bf16.msra.mxu0 %v1086
    %1165 = vmatprep.subr.bf16.mxu0 0
    %1166 = vmatpush1.bf16.msra.mxu0 %v1087
    %1167 = vmatprep.subr.bf16.mxu0 0
    %1168 = vmatpush1.bf16.msra.mxu0 %v1088
    %1169 = vmatprep.mubr.bf16.mxu0 %v871
    %1170 = vmatmul.mubr.bf16.gmra.mrb[0].mxu0 %v870
    %v1171 = vpop.f32.mrb[0].mxu0
    %v1172 = vadd.f32 %v943, %v1171
    %v1173 = vpop.f32.mrb[0].mxu0
    %v1174 = vpop.f32.mrb[0].mxu0
    %v1175 = vpop.f32.mrb[0].mxu0
    %1176 = vdwg.mxu0
    %1177 = vmatprep.subr.bf16.mxu0 0
    %1178 = vmatpush1.bf16.msra.mxu0 %v1089
    %1179 = vmatprep.subr.bf16.mxu0 0
    %1180 = vmatpush1.bf16.msra.mxu0 %v1090
    %1181 = vmatprep.subr.bf16.mxu0 0
    %1182 = vmatpush1.bf16.msra.mxu0 %v1091
    %1183 = vmatprep.subr.bf16.mxu0 0
    %1184 = vmatpush1.bf16.msra.mxu0 %v1092
    %1185 = vmatprep.subr.bf16.mxu0 0
    %1186 = vmatpush1.bf16.msra.mxu0 %v1093
    %1187 = vmatprep.subr.bf16.mxu0 0
    %1188 = vmatpush1.bf16.msra.mxu0 %v1094
    %1189 = vmatprep.subr.bf16.mxu0 0
    %1190 = vmatpush1.bf16.msra.mxu0 %v1095
    %1191 = vmatprep.subr.bf16.mxu0 0
    %1192 = vmatpush1.bf16.msra.mxu0 %v1096
    %1193 = vmatprep.subr.bf16.mxu0 0
    %1194 = vmatpush1.bf16.msra.mxu0 %v1097
    %1195 = vmatprep.subr.bf16.mxu0 0
    %1196 = vmatpush1.bf16.msra.mxu0 %v1098
    %1197 = vmatprep.subr.bf16.mxu0 0
    %1198 = vmatpush1.bf16.msra.mxu0 %v1099
    %1199 = vmatprep.subr.bf16.mxu0 0
    %1200 = vmatpush1.bf16.msra.mxu0 %v1100
    %1201 = vmatprep.subr.bf16.mxu0 0
    %1202 = vmatpush1.bf16.msra.mxu0 %v1101
    %1203 = vmatprep.subr.bf16.mxu0 0
    %1204 = vmatpush1.bf16.msra.mxu0 %v1102
    %1205 = vmatprep.subr.bf16.mxu0 0
    %1206 = vmatpush1.bf16.msra.mxu0 %v1103
    %1207 = vmatprep.subr.bf16.mxu0 0
    %1208 = vmatpush1.bf16.msra.mxu0 %v1104
    %1209 = vmatprep.mubr.bf16.mxu0 %v873
    %1210 = vmatmul.mubr.bf16.gmra.mrb[0].mxu0 %v872
    %v1211 = vpop.f32.mrb[0].mxu0
    %v1212 = vadd.f32 %v1172, %v1211
    %v1213 = vpop.f32.mrb[0].mxu0
    %v1214 = vpop.f32.mrb[0].mxu0
    %v1215 = vpop.f32.mrb[0].mxu0
    %1216 = vdwg.mxu0
    %vm1217 = vcmask 9216
    %1218 = vst.msk [vmem:[%s11] sm:$0x3] %vm1217, %v1212
    // Predicated region
    $region62: #{critic_forward.1} parent=1 // pred_check
      _
    $region63: #{critic_forward.1} parent=1 // pred_check_branch
      %1220 = sbr.rel (0) target = $region65
    $region64: #{critic_forward.1} parent=1 // pred_region
      _
    $region65: #{critic_forward.1} parent=1 // pred_fallthru
      _
    // Predicated region
    $region66: #{critic_forward.1} parent=1 // pred_check
      _
    $region67: #{critic_forward.1} parent=1 // pred_check_branch
      %1222 = sbr.rel (0) target = $region69
    $region68: #{critic_forward.1} parent=1 // pred_region
      _
    $region69: #{critic_forward.1} parent=1 // pred_fallthru
      _
    %1223 = vsyncpa [#allocation3], 1
    %1224 = vsyncpa [#allocation5], 1
    %1225 = vsyncpa [#allocation8], 1

</llo_original>
